<compile_context>
chip_gen: v7x
topology: tpu7x:2x2x1
jax: 0.10.0
libtpu: 0.0.40
codegen_flags: <defaults>
</compile_context>

<pallas_src>
import functools

import jax
import jax.numpy as jnp
import numpy as np
from jax.experimental import pallas as pl
from jax.experimental.pallas import tpu as pltpu


# ----------------------------------------------------------------------------
# Kernel
# ----------------------------------------------------------------------------
def _rope_kernel(cos_ref, sin_ref, xq_ref, xk_ref, oq_ref, ok_ref):
    cos = cos_ref[...]       # (tS, tHD) f32
    sin = sin_ref[...]       # (tS, tHD) f32, signed: -sin on even lanes, +sin on odd
    ts, thd = cos.shape

    # Parity mask over tile-local lanes. Tile widths are even (multiples of
    # 128 or the full even HD), so tile-local parity == global lane parity.
    lane = jax.lax.broadcasted_iota(jnp.int32, (ts, thd), 1)
    is_even = (lane & 1) == 0

    def apply(x_ref, o_ref):
        x = x_ref[...].astype(jnp.float32)            # (tS, tHD)
        # XLU lane rotations (axis must be non-negative for pltpu.roll).
        left = pltpu.roll(x, shift=thd - 1, axis=1)   # left[j]  = x[j+1]
        right = pltpu.roll(x, shift=1, axis=1)        # right[j] = x[j-1]
        # Pair swap: even lanes take the right neighbour's value (x[j+1]),
        # odd lanes take the left neighbour's (x[j-1]).  Wrapped lanes are
        # never selected, so head / tile boundaries are exact.
        swapped = jnp.where(is_even, left, right)
        o_ref[...] = (x * cos + swapped * sin).astype(o_ref.dtype)

    apply(xq_ref, oq_ref)
    apply(xk_ref, ok_ref)


# ----------------------------------------------------------------------------
# One-time (init-time) table construction -- NOT in the per-call hot path.
# ----------------------------------------------------------------------------
def precompute_freqs_cis(dim: int, end: int, theta: float = 10000.0):
    """Returns (cos, sin), each [end, dim//2] f32 (real view of complex cis)."""
    freqs = 1.0 / (theta ** (jnp.arange(0, dim, 2, dtype=jnp.float32) / dim))
    t = jnp.arange(end, dtype=jnp.float32)
    angles = jnp.outer(t, freqs)                      # (end, dim//2)
    return jnp.cos(angles), jnp.sin(angles)


def build_rope_tables(cos, sin, n_heads: int):
    """Lane-expanded f32 tables [max_seq, H*D]: cos_full and signed sin.

    cos_full  : cos_i duplicated over each (re, im) pair, tiled across heads.
    sin_signed: -sin_i on even lanes, +sin_i on odd lanes, tiled across heads.
    Call once at model init; pass the results to rotary_embedding().
    """
    max_seq, half = cos.shape
    d = 2 * half
    cos_f = cos.astype(jnp.float32)
    sin_f = sin.astype(jnp.float32)
    cos_full = jnp.tile(jnp.repeat(cos_f, 2, axis=-1), (1, n_heads))
    sin_signed = jnp.tile(
        jnp.stack([-sin_f, sin_f], axis=-1).reshape(max_seq, d), (1, n_heads))
    return cos_full, sin_signed


# ----------------------------------------------------------------------------
# Tiling / VMEM heuristics
# ----------------------------------------------------------------------------
def _vmem_config():
    """(per-tile VMEM budget bytes, scoped vmem_limit_bytes), per generation."""
    try:
        cap = pltpu.get_tpu_info().vmem_capacity_bytes
    except Exception:  # no TPU info available -> stay conservative
        cap = 0
    if cap >= (100 << 20):            # v5e / v6e: 128 MiB physical VMEM
        return 24 << 20, 64 << 20
    return 12 << 20, 32 << 20         # v7x (64 MiB physical) or unknown


def _choose_tiles(S: int, HD: int, itemsize: int, batch: int,
                  vmem_budget_bytes: int):
    """Pick (seq_tile, lane_tile).

    lane_tile divides HD and is a multiple of 128 (or the full HD) so stores
    stay unmasked full-lane vst; seq_tile is a sublane multiple chosen from
    the VMEM budget, partial last block handled by a cdiv grid.
    """
    # Lane-axis tile (only kicks in for multi-thousand-lane HD, e.g. v7x).
    hd_cap = 2048
    if HD <= hd_cap or HD % 128 != 0:
        t_hd = HD
    else:
        t_hd = 128
        d = hd_cap - (hd_cap % 128)
        while d >= 128:
            if HD % d == 0:
                t_hd = d
                break
            d -= 128

    # Sublane granularity: 8 rows for 4-byte dtypes, 16 for 2-byte (bf16 pack).
    sub = 8 if itemsize >= 4 else 16

    # Double-buffered per-step footprint: 2 f32 tables + (2 in + 2 out)
    # activation blocks, each (t_s, t_hd).
    bytes_per_row = 2 * t_hd * (2 * 4 + 4 * itemsize)
    cap = max(sub, vmem_budget_bytes // bytes_per_row)
    cap = min(cap, 1024, S)
    if batch == 1:
        # Ensure >= 2 seq blocks so both v7x TensorCores get work.
        cap = min(cap, pl.cdiv(S, 2))
    t_s = max(sub, (cap // sub) * sub)   # round down to sublane multiple
    t_s = min(t_s, S)                    # t_s == S (full dim) is also legal
    return t_s, t_hd


# ----------------------------------------------------------------------------
# Jitted entry point (forward pass of RotaryEmbedding)
# ----------------------------------------------------------------------------
@jax.jit
def rotary_embedding(xq, xk, cos_full, sin_signed):
    """xq, xk: [B, S, H, D]; cos_full/sin_signed: [max_seq, H*D] f32 tables
    built once by build_rope_tables().  Returns rotated (xq, xk)."""
    B, S, H, D = xq.shape
    assert D % 2 == 0
    HD = H * D
    assert cos_full.shape == sin_signed.shape
    assert cos_full.shape[0] >= S and cos_full.shape[1] == HD

    vmem_budget, vmem_limit = _vmem_config()
    t_s, t_hd = _choose_tiles(S, HD, xq.dtype.itemsize, B, vmem_budget)
    n_s = pl.cdiv(S, t_s)          # partial last seq block is masked by Pallas
    n_hd = HD // t_hd

    xq_f = xq.reshape(B, S, HD)
    xk_f = xk.reshape(B, S, HD)

    # Tables: index_map does not depend on b (innermost grid axis) -> they stay
    # VMEM-resident across the batch loop (no re-DMA per b).
    tbl_spec = pl.BlockSpec((t_s, t_hd), lambda s, h, b: (s, h))
    # Activations: batch dim squeezed -> clean 2-D (t_s, t_hd) tiles in-kernel.
    act_spec = pl.BlockSpec((None, t_s, t_hd), lambda s, h, b: (b, s, h))

    oq, ok = pl.pallas_call(
        _rope_kernel,
        out_shape=(
            jax.ShapeDtypeStruct((B, S, HD), xq.dtype),
            jax.ShapeDtypeStruct((B, S, HD), xk.dtype),
        ),
        grid=(n_s, n_hd, B),                      # b innermost (fastest varying)
        in_specs=[tbl_spec, tbl_spec, act_spec, act_spec],
        out_specs=(act_spec, act_spec),
        compiler_params=pltpu.CompilerParams(
            dimension_semantics=("parallel", "parallel", "arbitrary"),
            vmem_limit_bytes=vmem_limit,
        ),
    )(cos_full, sin_signed, xq_f, xk_f)

    return oq.reshape(B, S, H, D), ok.reshape(B, S, H, D)


# ----------------------------------------------------------------------------
# Pure-JAX reference (matches the PyTorch complex-view semantics)
# ----------------------------------------------------------------------------
def _rope_reference(xq, xk, cos, sin):
    B, S, H, D = xq.shape
    c = cos[:S].astype(jnp.float32)[None, :, None, :]   # (1, S, 1, D/2)
    s = sin[:S].astype(jnp.float32)[None, :, None, :]

    def one(x):
        xf = x.astype(jnp.float32).reshape(B, S, H, D // 2, 2)
        xr, xi = xf[..., 0], xf[..., 1]
        out_r = xr * c - xi * s
        out_i = xi * c + xr * s
        out = jnp.stack([out_r, out_i], axis=-1).reshape(B, S, H, D)
        return out.astype(x.dtype)

    return one(xq), one(xk)


if __name__ == "__main__":
    B, S, H, D = 2, 8, 4, 32
    MAX_SEQ = 16
    THETA = 10000.0

    key = jax.random.PRNGKey(0)
    kq, kk = jax.random.split(key)
    xq = jax.random.normal(kq, (B, S, H, D), dtype=jnp.float32)
    xk = jax.random.normal(kk, (B, S, H, D), dtype=jnp.float32)

    # Init-time precompute (hoisted out of the per-call path).
    cos, sin = precompute_freqs_cis(D, MAX_SEQ, THETA)
    cos_full, sin_signed = build_rope_tables(cos, sin, H)
    cos_full, sin_signed = jax.block_until_ready((cos_full, sin_signed))

    # Case 1: S divisible by the seq tile.
    oq, ok = rotary_embedding(xq, xk, cos_full, sin_signed)
    jax.block_until_ready((oq, ok))
    rq, rk = _rope_reference(xq, xk, cos, sin)
    np.testing.assert_allclose(np.asarray(oq), np.asarray(rq), atol=1e-5, rtol=1e-5)
    np.testing.assert_allclose(np.asarray(ok), np.asarray(rk), atol=1e-5, rtol=1e-5)

    # Case 2: S not divisible by the seq tile -> exercises the cdiv grid /
    # masked partial last block path.
    S2 = 12
    xq2 = jax.random.normal(kq, (B, S2, H, D), dtype=jnp.float32)
    xk2 = jax.random.normal(kk, (B, S2, H, D), dtype=jnp.float32)
    oq2, ok2 = rotary_embedding(xq2, xk2, cos_full, sin_signed)
    jax.block_until_ready((oq2, ok2))
    rq2, rk2 = _rope_reference(xq2, xk2, cos, sin)
    np.testing.assert_allclose(np.asarray(oq2), np.asarray(rq2), atol=1e-5, rtol=1e-5)
    np.testing.assert_allclose(np.asarray(ok2), np.asarray(rk2), atol=1e-5, rtol=1e-5)

    print("KERNEL_OK")
</pallas_src>

<mosaic_0001>
module attributes {stable_mosaic.version = 11 : i64} {
  func.func @_rope_kernel(%arg0: i32, %arg1: i32, %arg2: i32, %arg3: memref<8x128xf32, #tpu.memory_space<vmem>>, %arg4: memref<8x128xf32, #tpu.memory_space<vmem>>, %arg5: memref<1x8x128xf32, #tpu.memory_space<vmem>>, %arg6: memref<1x8x128xf32, #tpu.memory_space<vmem>>, %arg7: memref<1x8x128xf32, #tpu.memory_space<vmem>>, %arg8: memref<1x8x128xf32, #tpu.memory_space<vmem>>) attributes {dimension_semantics = [#tpu.dimension_semantics<parallel>, #tpu.dimension_semantics<parallel>, #tpu.dimension_semantics<arbitrary>], iteration_bounds = array<i64: 1, 1, 2>, scalar_prefetch = 0 : i64, scratch_operands = 0 : i64, tpu.core_type = #tpu.core_type<tc>, window_params = [{transform_indices = @transform_0, window_bounds = array<i64: 8, 128>}, {transform_indices = @transform_1, window_bounds = array<i64: 8, 128>}, {transform_indices = @transform_2, window_bounds = array<i64: 1, 8, 128>}, {transform_indices = @transform_3, window_bounds = array<i64: 1, 8, 128>}, {transform_indices = @transform_4, window_bounds = array<i64: 1, 8, 128>}, {transform_indices = @transform_5, window_bounds = array<i64: 1, 8, 128>}]} {
    %c0 = arith.constant 0 : index
    %c0_0 = arith.constant 0 : index
    %0 = vector.load %arg3[%c0, %c0_0] : memref<8x128xf32, #tpu.memory_space<vmem>>, vector<8x128xf32>
    %c0_1 = arith.constant 0 : index
    %c0_2 = arith.constant 0 : index
    %1 = vector.load %arg4[%c0_1, %c0_2] : memref<8x128xf32, #tpu.memory_space<vmem>>, vector<8x128xf32>
    %2 = tpu.iota {dimensions = array<i32: 1>} : vector<8x128xi32>
    %c1_i32 = arith.constant 1 : i32
    %3 = vector.broadcast %c1_i32 : i32 to vector<8x128xi32>
    %4 = arith.andi %2, %3 : vector<8x128xi32>
    %c0_i32 = arith.constant 0 : i32
    %5 = vector.broadcast %c0_i32 : i32 to vector<8x128xi32>
    %6 = arith.cmpi eq, %4, %5 : vector<8x128xi32>
    %c0_3 = arith.constant 0 : index
    %c0_4 = arith.constant 0 : index
    %c0_5 = arith.constant 0 : index
    %7 = vector.load %arg5[%c0_3, %c0_4, %c0_5] : memref<1x8x128xf32, #tpu.memory_space<vmem>>, vector<1x8x128xf32>
    %8 = vector.shape_cast %7 : vector<1x8x128xf32> to vector<8x128xf32>
    %c127_i32 = arith.constant 127 : i32
    %9 = tpu.dynamic_rotate %8 by %c127_i32 dim 1 : vector<8x128xf32>, i32 -> vector<8x128xf32>
    %c1_i32_6 = arith.constant 1 : i32
    %10 = tpu.dynamic_rotate %8 by %c1_i32_6 dim 1 : vector<8x128xf32>, i32 -> vector<8x128xf32>
    %11 = arith.select %6, %9, %10 : vector<8x128xi1>, vector<8x128xf32>
    %12 = arith.mulf %8, %0 : vector<8x128xf32>
    %13 = arith.mulf %11, %1 : vector<8x128xf32>
    %14 = arith.addf %12, %13 : vector<8x128xf32>
    %c0_7 = arith.constant 0 : index
    %c0_8 = arith.constant 0 : index
    %c0_9 = arith.constant 0 : index
    %15 = vector.load %arg7[%c0_7, %c0_8, %c0_9] : memref<1x8x128xf32, #tpu.memory_space<vmem>>, vector<1x8x128xf32>
    %16 = vector.shape_cast %15 : vector<1x8x128xf32> to vector<8x128xf32>
    %17 = vector.shape_cast %14 : vector<8x128xf32> to vector<1x8x128xf32>
    tpu.vector_store %arg7[%c0_7, %c0_8, %c0_9], %17 {strides = array<i32>} : memref<1x8x128xf32, #tpu.memory_space<vmem>>, vector<1x8x128xf32>,
    %c0_10 = arith.constant 0 : index
    %c0_11 = arith.constant 0 : index
    %c0_12 = arith.constant 0 : index
    %18 = vector.load %arg6[%c0_10, %c0_11, %c0_12] : memref<1x8x128xf32, #tpu.memory_space<vmem>>, vector<1x8x128xf32>
    %19 = vector.shape_cast %18 : vector<1x8x128xf32> to vector<8x128xf32>
    %c127_i32_13 = arith.constant 127 : i32
    %20 = tpu.dynamic_rotate %19 by %c127_i32_13 dim 1 : vector<8x128xf32>, i32 -> vector<8x128xf32>
    %c1_i32_14 = arith.constant 1 : i32
    %21 = tpu.dynamic_rotate %19 by %c1_i32_14 dim 1 : vector<8x128xf32>, i32 -> vector<8x128xf32>
    %22 = arith.select %6, %20, %21 : vector<8x128xi1>, vector<8x128xf32>
    %23 = arith.mulf %19, %0 : vector<8x128xf32>
    %24 = arith.mulf %22, %1 : vector<8x128xf32>
    %25 = arith.addf %23, %24 : vector<8x128xf32>
    %c0_15 = arith.constant 0 : index
    %c0_16 = arith.constant 0 : index
    %c0_17 = arith.constant 0 : index
    %26 = vector.load %arg8[%c0_15, %c0_16, %c0_17] : memref<1x8x128xf32, #tpu.memory_space<vmem>>, vector<1x8x128xf32>
    %27 = vector.shape_cast %26 : vector<1x8x128xf32> to vector<8x128xf32>
    %28 = vector.shape_cast %25 : vector<8x128xf32> to vector<1x8x128xf32>
    tpu.vector_store %arg8[%c0_15, %c0_16, %c0_17], %28 {strides = array<i32>} : memref<1x8x128xf32, #tpu.memory_space<vmem>>, vector<1x8x128xf32>,
    return
  }
  func.func @transform_0(%arg0: i32, %arg1: i32, %arg2: i32) -> (i32, i32) {
    %c0_i32 = arith.constant 0 : i32
    return %arg0, %arg1 : i32, i32
  }
  func.func @transform_1(%arg0: i32, %arg1: i32, %arg2: i32) -> (i32, i32) {
    %c0_i32 = arith.constant 0 : i32
    return %arg0, %arg1 : i32, i32
  }
  func.func @transform_2(%arg0: i32, %arg1: i32, %arg2: i32) -> (i32, i32, i32) {
    %c0_i32 = arith.constant 0 : i32
    return %arg2, %arg0, %arg1 : i32, i32, i32
  }
  func.func @transform_3(%arg0: i32, %arg1: i32, %arg2: i32) -> (i32, i32, i32) {
    %c0_i32 = arith.constant 0 : i32
    return %arg2, %arg0, %arg1 : i32, i32, i32
  }
  func.func @transform_4(%arg0: i32, %arg1: i32, %arg2: i32) -> (i32, i32, i32) {
    %c0_i32 = arith.constant 0 : i32
    return %arg2, %arg0, %arg1 : i32, i32, i32
  }
  func.func @transform_5(%arg0: i32, %arg1: i32, %arg2: i32) -> (i32, i32, i32) {
    %c0_i32 = arith.constant 0 : i32
    return %arg2, %arg0, %arg1 : i32, i32, i32
  }
}

</mosaic_0001>

<llo_original>
// kernel: rotary_embedding.1
$region0: #{rotary_embedding.1}
  #allocation0 [shape = 'u32[]', space=smem, size = 0x4, offset = 0x4, fixed_abs, tag = 'smem constant byte address 0x4 - core index']
  #allocation1 [shape = 'u32[144,128]{1,0:T(1,128)}', space=vmem, size = 0x12000, scoped, tag = 'internal scratch']
  %s0 = inlined_call_operand.vmem [shape: f32[16,128], index: 0, kind: input, shape index: {}]
  %s1 = inlined_call_operand.vmem [shape: f32[16,128], index: 1, kind: input, shape index: {}]
  %s2 = inlined_call_operand.vmem [shape: f32[2,8,128], index: 2, kind: input, shape index: {}]
  %s3 = inlined_call_operand.vmem [shape: f32[2,8,128], index: 3, kind: input, shape index: {}]
  %s4 = inlined_call_operand.vmem [shape: f32[2,8,128], index: 4, kind: output, shape index: {0}]
  %s5 = inlined_call_operand.vmem [shape: f32[2,8,128], index: 5, kind: output, shape index: {1}]
  %6 = xla_tuple %s4, %s5
  %s7 = sld [smem:[#allocation0]]
  $region57: #{rotary_embedding.1} parent=0
    _
  %s9 = ssub.s32 1, %s7
  %s10 = scalar_select 0, %s9, %s7
  loop: start=0, step=1, limit=4
  $region2: #{rotary_embedding.1} parent=0 // loop_pre_header
    _
  $region3: #{rotary_embedding.1} parent=0 // loop_header
    %s12 = sphi 0, %s16
    %p13 = scmp.ge.s32.totalorder %s12, 4
    %s19 = sphi 0, %s38
    %s20 = sphi 0, %s34
    %s21 = sphi 0, %s30
    %s22 = sphi 0, %s19
    %s23 = sphi 0, %s20
    %s24 = sphi 0, %s21
    %s25 = sphi 0, %s22
    %s26 = sphi 0, %s23
    %s27 = sphi 0, %s24
    %s43 = sphi 0, %s45
    %s46 = sphi 0, %s43
    %s47 = sphi 0, %s46
    %s63 = sphi 0, %s47
    %s71 = sphi 0, %s73
    %s74 = sphi 0, %s71
    %s75 = sphi 0, %s74
    %s91 = sphi 0, %s75
    %s101 = sphi 0, %s103
    %s104 = sphi 0, %s101
    %s105 = sphi 0, %s104
    %s121 = sphi 0, %s105
    %s131 = sphi 0, %s133
    %s134 = sphi 0, %s131
    %s135 = sphi 0, %s134
    %s151 = sphi 0, %s135
    %s161 = sphi 0, %s163
    %s164 = sphi 0, %s161
    %s165 = sphi 0, %s164
    %s181 = sphi 0, %s165
    %s191 = sphi 0, %s193
    %s194 = sphi 0, %s191
    %s195 = sphi 0, %s194
    %s211 = sphi 0, %s195
  $region4: #{rotary_embedding.1} parent=0 // loop_header_branch
    %15 = sbr.rel (%p13) target = $region8
  $region5: #{rotary_embedding.1} parent=0 // loop_body
    %s17 = ssub.s32 %s12, 1
    %s18 = ssub.s32 %s12, 2
    %s28 = sadd.s32 1, %s21
    %p29 = scmp.ge.s32.totalorder %s28, 2
    %s30 = scalar_select %p29, 0, %s28
    %s31 = sadd.s32 1, %s20
    %s32 = scalar_select %p29, %s31, %s20
    %p33 = scmp.ge.s32.totalorder %s32, 1
    %s34 = scalar_select %p33, 0, %s32
    %s35 = sadd.s32 1, %s19
    %s36 = scalar_select %p33, %s35, %s19
    %p37 = scmp.ge.s32.totalorder %s36, 1
    %s38 = scalar_select %p37, 0, %s36
    %s39 = ssub.s32 %s19, %s38
    %s40 = ssub.s32 %s20, %s34
    %s41 = sor.u32 %s39, %s40
    %p42 = scmp.eq.s32.totalorder %s41, 0
    %s44 = sadd.s32 %s43, 1
    %s45 = scalar_select %p42, %s43, %s44
    %p48 = pneg %p42
    %p49 = scmp.eq.s32.totalorder %s12, 1
    %p50 = por %p48, %p49
    %p51 = scmp.ne.s32.totalorder %s43, %s46
    %p52 = scmp.eq.s32.totalorder %s12, 0
    %p53 = por %p51, %p52
    %p54 = scmp.ne.s32.totalorder %s43, %s46
    %p55 = scmp.eq.s32.totalorder %s17, 1
    %p56 = por %p54, %p55
    %p57 = scmp.ne.s32.totalorder %s46, %s47
    %p58 = scmp.eq.s32.totalorder %s17, 0
    %p59 = por %p57, %p58
    %p60 = scmp.ne.s32.totalorder %s46, %s47
    %p61 = scmp.eq.s32.totalorder %s18, 1
    %p62 = por %p60, %p61
    %p64 = scmp.ne.s32.totalorder %s47, %s63
    %p65 = scmp.eq.s32.totalorder %s18, 0
    %p66 = por %p64, %p65
    %s67 = ssub.s32 %s19, %s38
    %s68 = ssub.s32 %s20, %s34
    %s69 = sor.u32 %s67, %s68
    %p70 = scmp.eq.s32.totalorder %s69, 0
    %s72 = sadd.s32 %s71, 1
    %s73 = scalar_select %p70, %s71, %s72
    %p76 = pneg %p70
    %p77 = scmp.eq.s32.totalorder %s12, 1
    %p78 = por %p76, %p77
    %p79 = scmp.ne.s32.totalorder %s71, %s74
    %p80 = scmp.eq.s32.totalorder %s12, 0
    %p81 = por %p79, %p80
    %p82 = scmp.ne.s32.totalorder %s71, %s74
    %p83 = scmp.eq.s32.totalorder %s17, 1
    %p84 = por %p82, %p83
    %p85 = scmp.ne.s32.totalorder %s74, %s75
    %p86 = scmp.eq.s32.totalorder %s17, 0
    %p87 = por %p85, %p86
    %p88 = scmp.ne.s32.totalorder %s74, %s75
    %p89 = scmp.eq.s32.totalorder %s18, 1
    %p90 = por %p88, %p89
    %p92 = scmp.ne.s32.totalorder %s75, %s91
    %p93 = scmp.eq.s32.totalorder %s18, 0
    %p94 = por %p92, %p93
    %s95 = ssub.s32 %s21, %s30
    %s96 = ssub.s32 %s19, %s38
    %s97 = sor.u32 %s95, %s96
    %s98 = ssub.s32 %s20, %s34
    %s99 = sor.u32 %s97, %s98
    %p100 = scmp.eq.s32.totalorder %s99, 0
    %s102 = sadd.s32 %s101, 1
    %s103 = scalar_select %p100, %s101, %s102
    %p106 = pneg %p100
    %p107 = scmp.eq.s32.totalorder %s12, 1
    %p108 = por %p106, %p107
    %p109 = scmp.ne.s32.totalorder %s101, %s104
    %p110 = scmp.eq.s32.totalorder %s12, 0
    %p111 = por %p109, %p110
    %p112 = scmp.ne.s32.totalorder %s101, %s104
    %p113 = scmp.eq.s32.totalorder %s17, 1
    %p114 = por %p112, %p113
    %p115 = scmp.ne.s32.totalorder %s104, %s105
    %p116 = scmp.eq.s32.totalorder %s17, 0
    %p117 = por %p115, %p116
    %p118 = scmp.ne.s32.totalorder %s104, %s105
    %p119 = scmp.eq.s32.totalorder %s18, 1
    %p120 = por %p118, %p119
    %p122 = scmp.ne.s32.totalorder %s105, %s121
    %p123 = scmp.eq.s32.totalorder %s18, 0
    %p124 = por %p122, %p123
    %s125 = ssub.s32 %s21, %s30
    %s126 = ssub.s32 %s19, %s38
    %s127 = sor.u32 %s125, %s126
    %s128 = ssub.s32 %s20, %s34
    %s129 = sor.u32 %s127, %s128
    %p130 = scmp.eq.s32.totalorder %s129, 0
    %s132 = sadd.s32 %s131, 1
    %s133 = scalar_select %p130, %s131, %s132
    %p136 = pneg %p130
    %p137 = scmp.eq.s32.totalorder %s12, 1
    %p138 = por %p136, %p137
    %p139 = scmp.ne.s32.totalorder %s131, %s134
    %p140 = scmp.eq.s32.totalorder %s12, 0
    %p141 = por %p139, %p140
    %p142 = scmp.ne.s32.totalorder %s131, %s134
    %p143 = scmp.eq.s32.totalorder %s17, 1
    %p144 = por %p142, %p143
    %p145 = scmp.ne.s32.totalorder %s134, %s135
    %p146 = scmp.eq.s32.totalorder %s17, 0
    %p147 = por %p145, %p146
    %p148 = scmp.ne.s32.totalorder %s134, %s135
    %p149 = scmp.eq.s32.totalorder %s18, 1
    %p150 = por %p148, %p149
    %p152 = scmp.ne.s32.totalorder %s135, %s151
    %p153 = scmp.eq.s32.totalorder %s18, 0
    %p154 = por %p152, %p153
    %s155 = ssub.s32 %s21, %s30
    %s156 = ssub.s32 %s19, %s38
    %s157 = sor.u32 %s155, %s156
    %s158 = ssub.s32 %s20, %s34
    %s159 = sor.u32 %s157, %s158
    %p160 = scmp.eq.s32.totalorder %s159, 0
    %s162 = sadd.s32 %s161, 1
    %s163 = scalar_select %p160, %s161, %s162
    %p166 = pneg %p160
    %p167 = scmp.eq.s32.totalorder %s12, 1
    %p168 = por %p166, %p167
    %p169 = scmp.ne.s32.totalorder %s161, %s164
    %p170 = scmp.eq.s32.totalorder %s12, 0
    %p171 = por %p169, %p170
    %p172 = scmp.ne.s32.totalorder %s161, %s164
    %p173 = scmp.eq.s32.totalorder %s17, 1
    %p174 = por %p172, %p173
    %p175 = scmp.ne.s32.totalorder %s164, %s165
    %p176 = scmp.eq.s32.totalorder %s17, 0
    %p177 = por %p175, %p176
    %p178 = scmp.ne.s32.totalorder %s164, %s165
    %p179 = scmp.eq.s32.totalorder %s18, 1
    %p180 = por %p178, %p179
    %p182 = scmp.ne.s32.totalorder %s165, %s181
    %p183 = scmp.eq.s32.totalorder %s18, 0
    %p184 = por %p182, %p183
    %s185 = ssub.s32 %s21, %s30
    %s186 = ssub.s32 %s19, %s38
    %s187 = sor.u32 %s185, %s186
    %s188 = ssub.s32 %s20, %s34
    %s189 = sor.u32 %s187, %s188
    %p190 = scmp.eq.s32.totalorder %s189, 0
    %s192 = sadd.s32 %s191, 1
    %s193 = scalar_select %p190, %s191, %s192
    %p196 = pneg %p190
    %p197 = scmp.eq.s32.totalorder %s12, 1
    %p198 = por %p196, %p197
    %p199 = scmp.ne.s32.totalorder %s191, %s194
    %p200 = scmp.eq.s32.totalorder %s12, 0
    %p201 = por %p199, %p200
    %p202 = scmp.ne.s32.totalorder %s191, %s194
    %p203 = scmp.eq.s32.totalorder %s17, 1
    %p204 = por %p202, %p203
    %p205 = scmp.ne.s32.totalorder %s194, %s195
    %p206 = scmp.eq.s32.totalorder %s17, 0
    %p207 = por %p205, %p206
    %p208 = scmp.ne.s32.totalorder %s194, %s195
    %p209 = scmp.eq.s32.totalorder %s18, 1
    %p210 = por %p208, %p209
    %p212 = scmp.ne.s32.totalorder %s195, %s211
    %p213 = scmp.eq.s32.totalorder %s18, 0
    %p214 = por %p212, %p213
    %p215 = scmp.le.s32.totalorder 1, %s12
    %p216 = scmp.lt.s32.totalorder %s12, 3
    %p217 = pnand %p215, %p216
    %p218 = pneg %p217
    // Predicated region
    $region9: #{rotary_embedding.1} parent=5 // pred_check
      _
    $region10: #{rotary_embedding.1} parent=5 // pred_check_branch
      %220 = sbr.rel (%p217) target = $region12
    $region11: #{rotary_embedding.1} parent=5 // pred_region
      %s221 = ssub.s32 %s12, 1
      // Predicated region
      $region13: #{rotary_embedding.1} parent=11 // pred_check
        %p222 = pneg %p59
      $region14: #{rotary_embedding.1} parent=11 // pred_check_branch
        %224 = sbr.rel (%p222) target = $region16
      $region15: #{rotary_embedding.1} parent=11 // pred_region
        %p225 = scmp.lt.s32.totalorder %s22, 1
        %s226 = scalar_select %p225, %s22, 1
        %p227 = scmp.lt.s32.totalorder %s23, 0
        %s228 = scalar_select %p227, %s23, 0
        %s229 = sadd.s32 %s228, %s226
        %s230 = smul.addr %s229, 8
        %s231 = scalar_lea.vmem %s0, %s230
      $region16: #{rotary_embedding.1} parent=11 // pred_fallthru
        _
      // Predicated region
      $region17: #{rotary_embedding.1} parent=11 // pred_check
        %p232 = pneg %p87
      $region18: #{rotary_embedding.1} parent=11 // pred_check_branch
        %234 = sbr.rel (%p232) target = $region20
      $region19: #{rotary_embedding.1} parent=11 // pred_region
        %p235 = scmp.lt.s32.totalorder %s22, 1
        %s236 = scalar_select %p235, %s22, 1
        %p237 = scmp.lt.s32.totalorder %s23, 0
        %s238 = scalar_select %p237, %s23, 0
        %s239 = sadd.s32 %s238, %s236
        %s240 = smul.addr %s239, 8
        %s241 = scalar_lea.vmem %s1, %s240
      $region20: #{rotary_embedding.1} parent=11 // pred_fallthru
        _
    $region12: #{rotary_embedding.1} parent=5 // pred_fallthru
      _
    %p242 = scmp.lt.s32.totalorder %s12, 2
    // Predicated region
    $region21: #{rotary_embedding.1} parent=5 // pred_check
      %p243 = pneg %p242
    $region22: #{rotary_embedding.1} parent=5 // pred_check_branch
      %245 = sbr.rel (%p243) target = $region24
    $region23: #{rotary_embedding.1} parent=5 // pred_region
      // Predicated region
      $region25: #{rotary_embedding.1} parent=23 // pred_check
        %p246 = pneg %p111
      $region26: #{rotary_embedding.1} parent=23 // pred_check_branch
        %248 = sbr.rel (%p246) target = $region28
      $region27: #{rotary_embedding.1} parent=23 // pred_region
        %p249 = scmp.lt.s32.totalorder %s21, 1
        %s250 = scalar_select %p249, %s21, 1
        %p251 = scmp.lt.s32.totalorder %s19, 0
        %s252 = scalar_select %p251, %s19, 0
        %p253 = scmp.lt.s32.totalorder %s20, 0
        %s254 = scalar_select %p253, %s20, 0
        %s255 = sadd.s32 %s254, %s252
        %s256 = sadd.s32 %s255, %s250
        %s257 = smul.addr %s256, 8
        %s258 = scalar_lea.vmem %s2, %s257
      $region28: #{rotary_embedding.1} parent=23 // pred_fallthru
        _
      // Predicated region
      $region29: #{rotary_embedding.1} parent=23 // pred_check
        %p259 = pneg %p141
      $region30: #{rotary_embedding.1} parent=23 // pred_check_branch
        %261 = sbr.rel (%p259) target = $region32
      $region31: #{rotary_embedding.1} parent=23 // pred_region
        %p262 = scmp.lt.s32.totalorder %s21, 1
        %s263 = scalar_select %p262, %s21, 1
        %p264 = scmp.lt.s32.totalorder %s19, 0
        %s265 = scalar_select %p264, %s19, 0
        %p266 = scmp.lt.s32.totalorder %s20, 0
        %s267 = scalar_select %p266, %s20, 0
        %s268 = sadd.s32 %s267, %s265
        %s269 = sadd.s32 %s268, %s263
        %s270 = smul.addr %s269, 8
        %s271 = scalar_lea.vmem %s3, %s270
      $region32: #{rotary_embedding.1} parent=23 // pred_fallthru
        _
    $region24: #{rotary_embedding.1} parent=5 // pred_fallthru
      _
    %p272 = scmp.le.s32.totalorder 1, %s12
    %p273 = scmp.lt.s32.totalorder %s12, 3
    %p274 = pnand %p272, %p273
    %p275 = pneg %p274
    // Predicated region
    $region33: #{rotary_embedding.1} parent=5 // pred_check
      _
    $region34: #{rotary_embedding.1} parent=5 // pred_check_branch
      %277 = sbr.rel (%p274) target = $region36
    $region35: #{rotary_embedding.1} parent=5 // pred_region
      %s278 = ssub.s32 %s12, 1
      %p279 = scmp.lt.s32.totalorder %s22, 1
      %s280 = scalar_select %p279, %s22, 1
      %p281 = scmp.lt.s32.totalorder %s23, 0
      %s282 = scalar_select %p281, %s23, 0
      %s283 = sadd.s32 %s282, %s280
      %s284 = smul.addr %s283, 8
      %s285 = scalar_lea.vmem %s0, %s284
      %p286 = pneg %p59
      %p287 = pneg %p56
      %p288 = scmp.lt.s32.totalorder %s22, 1
      %s289 = scalar_select %p288, %s22, 1
      %p290 = scmp.lt.s32.totalorder %s23, 0
      %s291 = scalar_select %p290, %s23, 0
      %s292 = sadd.s32 %s291, %s289
      %s293 = smul.addr %s292, 8
      %s294 = scalar_lea.vmem %s1, %s293
      %p295 = pneg %p87
      %p296 = pneg %p84
      %p297 = scmp.lt.s32.totalorder %s24, 1
      %s298 = scalar_select %p297, %s24, 1
      %p299 = scmp.lt.s32.totalorder %s22, 0
      %s300 = scalar_select %p299, %s22, 0
      %p301 = scmp.lt.s32.totalorder %s23, 0
      %s302 = scalar_select %p301, %s23, 0
      %s303 = sadd.s32 %s302, %s300
      %s304 = sadd.s32 %s303, %s298
      %s305 = smul.addr %s304, 8
      %s306 = scalar_lea.vmem %s2, %s305
      %p307 = pneg %p117
      %p308 = pneg %p114
      %p309 = scmp.lt.s32.totalorder %s24, 1
      %s310 = scalar_select %p309, %s24, 1
      %p311 = scmp.lt.s32.totalorder %s22, 0
      %s312 = scalar_select %p311, %s22, 0
      %p313 = scmp.lt.s32.totalorder %s23, 0
      %s314 = scalar_select %p313, %s23, 0
      %s315 = sadd.s32 %s314, %s312
      %s316 = sadd.s32 %s315, %s310
      %s317 = smul.addr %s316, 8
      %s318 = scalar_lea.vmem %s3, %s317
      %p319 = pneg %p147
      %p320 = pneg %p144
      %p321 = pneg %p177
      %p322 = pneg %p174
      %p323 = scmp.lt.s32.totalorder %s24, 1
      %s324 = scalar_select %p323, %s24, 1
      %p325 = scmp.lt.s32.totalorder %s22, 0
      %s326 = scalar_select %p325, %s22, 0
      %p327 = scmp.lt.s32.totalorder %s23, 0
      %s328 = scalar_select %p327, %s23, 0
      %s329 = sadd.s32 %s328, %s326
      %s330 = sadd.s32 %s329, %s324
      %s331 = smul.addr %s330, 8
      %s332 = scalar_lea.vmem %s4, %s331
      %p333 = pneg %p207
      %p334 = pneg %p204
      %p335 = scmp.lt.s32.totalorder %s24, 1
      %s336 = scalar_select %p335, %s24, 1
      %p337 = scmp.lt.s32.totalorder %s22, 0
      %s338 = scalar_select %p337, %s22, 0
      %p339 = scmp.lt.s32.totalorder %s23, 0
      %s340 = scalar_select %p339, %s23, 0
      %s341 = sadd.s32 %s340, %s338
      %s342 = sadd.s32 %s341, %s336
      %s343 = smul.addr %s342, 8
      %s344 = scalar_lea.vmem %s5, %s343
      %p345 = scmp.lt.s32.totalorder %s22, 1
      %s346 = scalar_select %p345, %s22, 1
      %p347 = scmp.lt.s32.totalorder %s23, 0
      %s348 = scalar_select %p347, %s23, 0
      %s349 = sadd.s32 %s348, %s346
      %s350 = smul.addr %s349, 8
      %s351 = scalar_lea.vmem %s0, %s350
      %p352 = scmp.lt.s32.totalorder %s22, 1
      %s353 = scalar_select %p352, %s22, 1
      %p354 = scmp.lt.s32.totalorder %s23, 0
      %s355 = scalar_select %p354, %s23, 0
      %s356 = sadd.s32 %s355, %s353
      %s357 = smul.addr %s356, 8
      %s358 = scalar_lea.vmem %s1, %s357
      %p359 = scmp.lt.s32.totalorder %s24, 1
      %s360 = scalar_select %p359, %s24, 1
      %p361 = scmp.lt.s32.totalorder %s22, 0
      %s362 = scalar_select %p361, %s22, 0
      %p363 = scmp.lt.s32.totalorder %s23, 0
      %s364 = scalar_select %p363, %s23, 0
      %s365 = sadd.s32 %s364, %s362
      %s366 = sadd.s32 %s365, %s360
      %s367 = smul.addr %s366, 8
      %s368 = scalar_lea.vmem %s2, %s367
      %p369 = scmp.lt.s32.totalorder %s24, 1
      %s370 = scalar_select %p369, %s24, 1
      %p371 = scmp.lt.s32.totalorder %s22, 0
      %s372 = scalar_select %p371, %s22, 0
      %p373 = scmp.lt.s32.totalorder %s23, 0
      %s374 = scalar_select %p373, %s23, 0
      %s375 = sadd.s32 %s374, %s372
      %s376 = sadd.s32 %s375, %s370
      %s377 = smul.addr %s376, 8
      %s378 = scalar_lea.vmem %s3, %s377
      %p379 = scmp.lt.s32.totalorder %s24, 1
      %s380 = scalar_select %p379, %s24, 1
      %p381 = scmp.lt.s32.totalorder %s22, 0
      %s382 = scalar_select %p381, %s22, 0
      %p383 = scmp.lt.s32.totalorder %s23, 0
      %s384 = scalar_select %p383, %s23, 0
      %s385 = sadd.s32 %s384, %s382
      %s386 = sadd.s32 %s385, %s380
      %s387 = smul.addr %s386, 8
      %s388 = scalar_lea.vmem %s4, %s387
      %p389 = scmp.lt.s32.totalorder %s24, 1
      %s390 = scalar_select %p389, %s24, 1
      %p391 = scmp.lt.s32.totalorder %s22, 0
      %s392 = scalar_select %p391, %s22, 0
      %p393 = scmp.lt.s32.totalorder %s23, 0
      %s394 = scalar_select %p393, %s23, 0
      %s395 = sadd.s32 %s394, %s392
      %s396 = sadd.s32 %s395, %s390
      %s397 = smul.addr %s396, 8
      %s398 = scalar_lea.vmem %s5, %s397
      %v399 = vld [vmem:[%s351] sm:$0xff]
      %v400 = vld [vmem:[%s358] sm:$0xff]
      %v401 = vlaneseq
      %v402 = vand.u32 %v401, 127
      %v403 = vand.u32 %v402, 1
      %vm404 = vcmp.eq.s32.totalorder %v403, 0
      %v405 = vld [vmem:[%s368] sm:$0xff]
      %406 = vrot.lane.b32.xlu0 %v405, 127
      %v407 = vpop.permute.xlu0 %406
      %408 = vrot.lane.b32.xlu0 %v405, 1
      %v409 = vpop.permute.xlu0 %408
      %v410 = vsel %vm404, %v407, %v409
      %v411 = vmul.f32 %v405, %v399
      %v412 = vmul.f32 %v410, %v400
      %v413 = vadd.f32 %v411, %v412
      %414 = vst [vmem:[%s388] sm:$0xff] %v413
      %v415 = vld [vmem:[%s378] sm:$0xff]
      %416 = vrot.lane.b32.xlu0 %v415, 127
      %v417 = vpop.permute.xlu0 %416
      %418 = vrot.lane.b32.xlu0 %v415, 1
      %v419 = vpop.permute.xlu0 %418
      %v420 = vsel %vm404, %v417, %v419
      %v421 = vmul.f32 %v415, %v399
      %v422 = vmul.f32 %v420, %v400
      %v423 = vadd.f32 %v421, %v422
      %424 = vst [vmem:[%s398] sm:$0xff] %v423
      %p425 = scmp.lt.s32.totalorder %s24, 1
      %s426 = scalar_select %p425, %s24, 1
      %p427 = scmp.lt.s32.totalorder %s22, 0
      %s428 = scalar_select %p427, %s22, 0
      %p429 = scmp.lt.s32.totalorder %s23, 0
      %s430 = scalar_select %p429, %s23, 0
      %s431 = sadd.s32 %s430, %s428
      %s432 = sadd.s32 %s431, %s426
      %s433 = smul.addr %s432, 8
      %s434 = scalar_lea.vmem %s4, %s433
      %p435 = scmp.lt.s32.totalorder %s24, 1
      %s436 = scalar_select %p435, %s24, 1
      %p437 = scmp.lt.s32.totalorder %s22, 0
      %s438 = scalar_select %p437, %s22, 0
      %p439 = scmp.lt.s32.totalorder %s23, 0
      %s440 = scalar_select %p439, %s23, 0
      %s441 = sadd.s32 %s440, %s438
      %s442 = sadd.s32 %s441, %s436
      %s443 = smul.addr %s442, 8
      %s444 = scalar_lea.vmem %s5, %s443
      // Predicated region
      $region37: #{rotary_embedding.1} parent=35 // pred_check
        %p445 = pneg %p174
      $region38: #{rotary_embedding.1} parent=35 // pred_check_branch
        %447 = sbr.rel (%p445) target = $region40
      $region39: #{rotary_embedding.1} parent=35 // pred_region
        _
      $region40: #{rotary_embedding.1} parent=35 // pred_fallthru
        _
      // Predicated region
      $region41: #{rotary_embedding.1} parent=35 // pred_check
        %p448 = pneg %p204
      $region42: #{rotary_embedding.1} parent=35 // pred_check_branch
        %450 = sbr.rel (%p448) target = $region44
      $region43: #{rotary_embedding.1} parent=35 // pred_region
        _
      $region44: #{rotary_embedding.1} parent=35 // pred_fallthru
        _
    $region36: #{rotary_embedding.1} parent=5 // pred_fallthru
      _
    %p451 = scmp.le.s32.totalorder 2, %s12
    // Predicated region
    $region45: #{rotary_embedding.1} parent=5 // pred_check
      %p452 = pneg %p451
    $region46: #{rotary_embedding.1} parent=5 // pred_check_branch
      %454 = sbr.rel (%p452) target = $region48
    $region47: #{rotary_embedding.1} parent=5 // pred_region
      %s455 = ssub.s32 %s12, 2
      // Predicated region
      $region49: #{rotary_embedding.1} parent=47 // pred_check
        %p456 = pneg %p180
      $region50: #{rotary_embedding.1} parent=47 // pred_check_branch
        %458 = sbr.rel (%p456) target = $region52
      $region51: #{rotary_embedding.1} parent=47 // pred_region
        %p459 = scmp.lt.s32.totalorder %s27, 1
        %s460 = scalar_select %p459, %s27, 1
        %p461 = scmp.lt.s32.totalorder %s25, 0
        %s462 = scalar_select %p461, %s25, 0
        %p463 = scmp.lt.s32.totalorder %s26, 0
        %s464 = scalar_select %p463, %s26, 0
        %s465 = sadd.s32 %s464, %s462
        %s466 = sadd.s32 %s465, %s460
        %s467 = smul.addr %s466, 8
        %s468 = scalar_lea.vmem %s4, %s467
      $region52: #{rotary_embedding.1} parent=47 // pred_fallthru
        _
      // Predicated region
      $region53: #{rotary_embedding.1} parent=47 // pred_check
        %p469 = pneg %p210
      $region54: #{rotary_embedding.1} parent=47 // pred_check_branch
        %471 = sbr.rel (%p469) target = $region56
      $region55: #{rotary_embedding.1} parent=47 // pred_region
        %p472 = scmp.lt.s32.totalorder %s27, 1
        %s473 = scalar_select %p472, %s27, 1
        %p474 = scmp.lt.s32.totalorder %s25, 0
        %s475 = scalar_select %p474, %s25, 0
        %p476 = scmp.lt.s32.totalorder %s26, 0
        %s477 = scalar_select %p476, %s26, 0
        %s478 = sadd.s32 %s477, %s475
        %s479 = sadd.s32 %s478, %s473
        %s480 = smul.addr %s479, 8
        %s481 = scalar_lea.vmem %s5, %s480
      $region56: #{rotary_embedding.1} parent=47 // pred_fallthru
        _
    $region48: #{rotary_embedding.1} parent=5 // pred_fallthru
      _
  $region6: #{rotary_embedding.1} parent=0 // loop_footer
    %s16 = sadd.s32 1, %s12
  $region7: #{rotary_embedding.1} parent=0 // loop_footer_branch
    %11 = sbr.rel target = $region3
  $region8: #{rotary_embedding.1} parent=0 // loop_exit
    _

</llo_original>
